<compile_context>
chip_gen: v6e
topology: v6e:2x2x1
jax: 0.10.0
libtpu: 0.0.40
codegen_flags: <defaults>
</compile_context>

<pallas_src>
import functools
import math

import jax
import jax.numpy as jnp
from jax.experimental import pallas as pl
from jax.experimental.pallas import tpu as pltpu


_LANE = 128
_SUBLANE = 8
_VMEM_LIMIT_BYTES = 32 << 20       # explicit scoped-VMEM limit, safe on v5e/v6e/v7x
_PIPELINE_VMEM_BUDGET = 16 << 20   # budget for the double-buffered tile working set


def _round_up(x, m):
    return -(-x // m) * m


def _pick_fold(h, max_fold=16):
    """Smallest fold so fold*h is a multiple of 128 (lane-dense stores)."""
    f = _LANE // math.gcd(h, _LANE)
    return f if 1 < f <= max_fold else 1


def _pick_tile_rows(m, per_row_bytes, table_bytes, *,
                    vmem_budget=_PIPELINE_VMEM_BUDGET, min_grid=4,
                    min_tile=512, max_tile_rows=None):
    """VMEM-budgeted row-tile size: multiple of 8, keeps >= min_grid steps."""
    cap_user = None
    if max_tile_rows is not None:
        cap_user = max(_SUBLANE, (max_tile_rows // _SUBLANE) * _SUBLANE)
    if m <= min_tile and cap_user is None:
        return m
    avail = max(vmem_budget - 2 * table_bytes, 2 << 20)
    t = avail // (2 * per_row_bytes)                 # 2x: double-buffered in+out tiles
    t = max(_SUBLANE, (t // _SUBLANE) * _SUBLANE)
    cap = max(min_tile, _round_up(-(-m // min_grid), _SUBLANE))
    t = min(t, cap)
    if cap_user is not None:
        t = min(t, cap_user)
    return m if t >= m else t


# ----------------------------------------------------------------------------
# Non-ordinal path: one-hot @ table on the MXU (== argmax + gather for the
# documented strict-one-hot inputs).  Lane-dense fold done in the wrapper.
# ----------------------------------------------------------------------------
def _nonordinal_kernel(attr_ref, table_ref, out_ref):
    out_ref[...] = jnp.dot(
        attr_ref[...], table_ref[...],
        preferred_element_type=jnp.float32,
        precision=jax.lax.Precision.HIGHEST,     # exact f32 row gather on the MXU
    ).astype(out_ref.dtype)


def make_frag_encoder_nonordinal(emb_w, *, out_dtype=None, max_tile_rows=None,
                                 max_table_bytes=8 << 20):
    """FragEncoder(ordinal_encoding=False) forward.  Table/fold prep is hoisted
    here (init time), not per call."""
    emb_w = jnp.asarray(emb_w, dtype=jnp.float32)
    c, h = emb_w.shape
    out_dtype = emb_w.dtype if out_dtype is None else out_dtype

    fold = _pick_fold(h)
    if fold > 1 and (fold * c) * (fold * h) * 4 > max_table_bytes:
        fold = 1                                    # block-diag table would be too big
    if fold > 1:
        table = jnp.kron(jnp.eye(fold, dtype=emb_w.dtype), emb_w)   # (fold*C, fold*H)
    else:
        table = emb_w
    table = jax.block_until_ready(table)            # materialize once at init

    kdim, hdim = int(table.shape[0]), int(table.shape[1])
    table_bytes = kdim * hdim * 4
    per_row_bytes = 4 * (_round_up(kdim, _LANE) + _round_up(hdim, _LANE))

    # TODO(synk): for very large in_channels_substructure (>= ~256) an
    # index-gather path (scalar-prefetched indices, output-bandwidth bound)
    # would beat the O(C) one-hot read + matmul; not needed at these sizes.

    def forward(frag_attr):
        frag_attr = jnp.asarray(frag_attr, dtype=jnp.float32)
        n = frag_attr.shape[0]
        n_pad = _round_up(n, fold)
        x = frag_attr if n_pad == n else jnp.pad(frag_attr, ((0, n_pad - n), (0, 0)))
        m = n_pad // fold
        x2 = x.reshape(m, fold * c)

        tile_m = _pick_tile_rows(m, per_row_bytes, table_bytes,
                                 max_tile_rows=max_tile_rows)
        grid = (pl.cdiv(m, tile_m),)

        out = pl.pallas_call(
            _nonordinal_kernel,
            out_shape=jax.ShapeDtypeStruct((m, hdim), out_dtype),
            grid=grid,
            in_specs=[
                pl.BlockSpec((tile_m, kdim), lambda i: (i, 0)),
                pl.BlockSpec((kdim, hdim), lambda i: (0, 0)),   # VMEM-resident table
            ],
            out_specs=pl.BlockSpec((tile_m, hdim), lambda i: (i, 0)),
            compiler_params=pltpu.CompilerParams(
                dimension_semantics=("parallel",),
                vmem_limit_bytes=_VMEM_LIMIT_BYTES),
            cost_estimate=pl.CostEstimate(
                flops=int(2 * m * kdim * hdim),
                transcendentals=0,
                bytes_accessed=int(4 * (m * kdim + kdim * hdim + m * hdim))),
        )(x2, table)

        return out.reshape(n_pad, h)[:n]

    return forward


# ----------------------------------------------------------------------------
# Ordinal path: fused lookup + size-scale as ONE small MXU matmul per tile.
#   LHS  (T, fold*2V): per fragment, slot cls      holds size (scaled half),
#                      slot V + cls               holds 1.0  (plain half).
#   RHS  (fold*2V, fold*H): block-diag of [emb * first_half_mask;
#                                          emb * second_half_mask].
# Output presented lane-dense as (N/fold, fold*H).
# ----------------------------------------------------------------------------
def _ordinal_kernel(cls_ref, size_ref, table_ref, out_ref, *, fold, vocab):
    cls = cls_ref[...]                                   # (T, fold) int32
    size = size_ref[...].astype(jnp.float32)             # (T, fold)
    t = cls.shape[0]
    k = fold * 2 * vocab
    lane = jax.lax.broadcasted_iota(jnp.int32, (1, k), 1)
    lhs = jnp.zeros((t, k), dtype=jnp.float32)
    for f in range(fold):                                 # unrolled, fold <= 16
        cls_f = cls[:, f:f + 1]                           # (T, 1)
        size_f = size[:, f:f + 1]                         # (T, 1)
        seg = lane - f * 2 * vocab                        # (1, k)
        lhs = lhs + jnp.where(seg == cls_f, size_f, 0.0) \
                  + jnp.where(seg == cls_f + vocab, 1.0, 0.0)
    out_ref[...] = jnp.dot(
        lhs, table_ref[...],
        preferred_element_type=jnp.float32,
        precision=jax.lax.Precision.HIGHEST,
    ).astype(out_ref.dtype)


def make_frag_encoder_ordinal(emb_w, *, out_dtype=None, max_tile_rows=None,
                              max_table_bytes=4 << 20):
    """FragEncoder(ordinal_encoding=True) forward.  Table prep hoisted to init."""
    emb_w = jnp.asarray(emb_w, dtype=jnp.float32)
    v, h = emb_w.shape
    half = h // 2
    out_dtype = emb_w.dtype if out_dtype is None else out_dtype

    fold = _pick_fold(h)
    if fold > 1 and (fold * 2 * v) * (fold * h) * 4 > max_table_bytes:
        fold = 1
    chan = jnp.arange(h)
    first = (chan < half).astype(emb_w.dtype)[None, :]
    block = jnp.concatenate([emb_w * first, emb_w * (1.0 - first)], axis=0)   # (2V, H)
    table = jnp.kron(jnp.eye(fold, dtype=emb_w.dtype), block) if fold > 1 else block
    table = jax.block_until_ready(table)

    kdim, hdim = int(table.shape[0]), int(table.shape[1])
    table_bytes = kdim * hdim * 4
    # cls/size tiles are lane-padded to 128 in VMEM -> budget for that.
    per_row_bytes = 4 * (2 * _round_up(fold, _LANE) + _round_up(hdim, _LANE))

    kernel = functools.partial(_ordinal_kernel, fold=fold, vocab=v)

    def forward(frag_attr):
        n, two = frag_attr.shape
        assert two == 2, "Ordinal encoding requires 2 features: class and size"
        cls = frag_attr[:, 0].astype(jnp.int32)
        size = frag_attr[:, 1].astype(jnp.int32)
        n_pad = _round_up(n, fold)
        if n_pad != n:
            cls = jnp.pad(cls, (0, n_pad - n))
            size = jnp.pad(size, (0, n_pad - n))
        m = n_pad // fold
        cls2 = cls.reshape(m, fold)
        size2 = size.reshape(m, fold)

        tile_m = _pick_tile_rows(m, per_row_bytes, table_bytes,
                                 max_tile_rows=max_tile_rows)
        grid = (pl.cdiv(m, tile_m),)

        out = pl.pallas_call(
            kernel,
            out_shape=jax.ShapeDtypeStruct((m, hdim), out_dtype),
            grid=grid,
            in_specs=[
                pl.BlockSpec((tile_m, fold), lambda i: (i, 0)),
                pl.BlockSpec((tile_m, fold), lambda i: (i, 0)),
                pl.BlockSpec((kdim, hdim), lambda i: (0, 0)),    # VMEM-resident table
            ],
            out_specs=pl.BlockSpec((tile_m, hdim), lambda i: (i, 0)),
            compiler_params=pltpu.CompilerParams(
                dimension_semantics=("parallel",),
                vmem_limit_bytes=_VMEM_LIMIT_BYTES),
            cost_estimate=pl.CostEstimate(
                flops=int(2 * m * kdim * hdim + 8 * m * kdim),
                transcendentals=0,
                bytes_accessed=int(4 * (2 * m * fold + kdim * hdim + m * hdim))),
        )(cls2, size2, table)

        return out.reshape(n_pad, h)[:n]

    return forward


# Thin functional conveniences (factory builds tables once per call here; prefer
# the make_* factories when the encoder is reused).
def frag_encoder_nonordinal(frag_attr, emb_w, **kw):
    return make_frag_encoder_nonordinal(emb_w, **kw)(frag_attr)


def frag_encoder_ordinal(frag_attr, emb_w, **kw):
    return make_frag_encoder_ordinal(emb_w, **kw)(frag_attr)


# ----------------------------------------------------------------------------
# Pure-JAX references (mirror the PyTorch forward) for correctness checking.
# ----------------------------------------------------------------------------
def ref_nonordinal(frag_attr, emb_w):
    idx = jnp.argmax(frag_attr, axis=1)
    return emb_w[idx]


def ref_ordinal(frag_attr, emb_w):
    hidden = emb_w.shape[1]
    half = hidden // 2
    enc = emb_w[frag_attr[:, 0]]
    scaled = frag_attr[:, 1:2].astype(enc.dtype) * enc[:, :half]
    return jnp.concatenate([scaled, enc[:, half:]], axis=1)


if __name__ == "__main__":
    key = jax.random.PRNGKey(0)
    k1, k2, k3, k4, k5, k6, k7, k8 = jax.random.split(key, 8)

    num_fragments = 8
    in_channels_substructure = 16
    hidden_channels = 32

    # --- non-ordinal FragEncoder: Embedding(16, 32), small case
    #     (exercises the lane-dense folded path: fold = 128 // 32 = 4) -------
    emb_w_nonord = jax.random.normal(
        k1, (in_channels_substructure, hidden_channels), dtype=jnp.float32)
    frag_idx = jax.random.randint(k2, (num_fragments,), 0, in_channels_substructure)
    frag_attr_onehot = jax.nn.one_hot(
        frag_idx, in_channels_substructure, dtype=jnp.float32)

    enc_nonord = make_frag_encoder_nonordinal(emb_w_nonord)
    out_nonord = jax.block_until_ready(enc_nonord(frag_attr_onehot))
    assert out_nonord.shape == (num_fragments, hidden_channels)
    assert jnp.allclose(out_nonord, ref_nonordinal(frag_attr_onehot, emb_w_nonord),
                        atol=1e-5, rtol=1e-5)

    # --- non-ordinal, H=48 (generalized fold = 128/gcd(48,128) = 8, pads N) --
    emb_w_48 = jax.random.normal(k6, (in_channels_substructure, 48), dtype=jnp.float32)
    idx_48 = jax.random.randint(k7, (6,), 0, in_channels_substructure)
    attr_48 = jax.nn.one_hot(idx_48, in_channels_substructure, dtype=jnp.float32)
    out_48 = jax.block_until_ready(frag_encoder_nonordinal(attr_48, emb_w_48))
    assert out_48.shape == (6, 48)
    assert jnp.allclose(out_48, ref_nonordinal(attr_48, emb_w_48), atol=1e-5, rtol=1e-5)

    # --- non-ordinal, un-foldable H (fold capped -> fallback, masked stores) -
    emb_w_100 = jax.random.normal(k8, (in_channels_substructure, 100), dtype=jnp.float32)
    out_100 = jax.block_until_ready(frag_encoder_nonordinal(frag_attr_onehot, emb_w_100))
    assert jnp.allclose(out_100, ref_nonordinal(frag_attr_onehot, emb_w_100),
                        atol=1e-5, rtol=1e-5)

    # --- non-ordinal, multi-tile grid with a partial last block -------------
    n_big = 1040
    idx_big = jax.random.randint(k2, (n_big,), 0, in_channels_substructure)
    attr_big = jax.nn.one_hot(idx_big, in_channels_substructure, dtype=jnp.float32)
    out_big = jax.block_until_ready(
        frag_encoder_nonordinal(attr_big, emb_w_nonord, max_tile_rows=64))
    assert jnp.allclose(out_big, ref_nonordinal(attr_big, emb_w_nonord),
                        atol=1e-5, rtol=1e-5)

    # --- ordinal FragEncoder: Embedding(4, 32), scale first half by size ----
    emb_w_ord = jax.random.normal(k3, (4, hidden_channels), dtype=jnp.float32)
    frag_cls = jax.random.randint(k4, (num_fragments, 1), 0, 4, dtype=jnp.int32)
    frag_size = jax.random.randint(k5, (num_fragments, 1), 1, 7, dtype=jnp.int32)
    frag_attr_ordinal = jnp.concatenate([frag_cls, frag_size], axis=1)

    enc_ord = make_frag_encoder_ordinal(emb_w_ord)
    out_ord = jax.block_until_ready(enc_ord(frag_attr_ordinal))
    assert out_ord.shape == (num_fragments, hidden_channels)
    assert jnp.allclose(out_ord, ref_ordinal(frag_attr_ordinal, emb_w_ord),
                        atol=1e-5, rtol=1e-5)

    # --- ordinal, H=128 (fold == 1 path) -------------------------------------
    emb_w_ord128 = jax.random.normal(k6, (4, 128), dtype=jnp.float32)
    out_ord128 = jax.block_until_ready(
        frag_encoder_ordinal(frag_attr_ordinal, emb_w_ord128))
    assert jnp.allclose(out_ord128, ref_ordinal(frag_attr_ordinal, emb_w_ord128),
                        atol=1e-5, rtol=1e-5)

    # --- ordinal, multi-tile grid with a partial last block -----------------
    cls_big = jax.random.randint(k4, (n_big, 1), 0, 4, dtype=jnp.int32)
    size_big = jax.random.randint(k5, (n_big, 1), 1, 7, dtype=jnp.int32)
    attr_ord_big = jnp.concatenate([cls_big, size_big], axis=1)
    out_ord_big = jax.block_until_ready(
        frag_encoder_ordinal(attr_ord_big, emb_w_ord, max_tile_rows=64))
    assert jnp.allclose(out_ord_big, ref_ordinal(attr_ord_big, emb_w_ord),
                        atol=1e-5, rtol=1e-5)

    print("KERNEL_OK")
</pallas_src>

<mosaic_0001>
module attributes {stable_mosaic.version = 11 : i64} {
  func.func @_nonordinal_kernel(%arg0: i32, %arg1: memref<2x64xf32, #tpu.memory_space<vmem>>, %arg2: memref<64x128xf32, #tpu.memory_space<vmem>>, %arg3: memref<2x128xf32, #tpu.memory_space<vmem>>) attributes {dimension_semantics = [#tpu.dimension_semantics<parallel>], iteration_bounds = array<i64: 1>, scalar_prefetch = 0 : i64, scratch_operands = 0 : i64, tpu.core_type = #tpu.core_type<tc>, window_params = [{transform_indices = @transform_0, window_bounds = array<i64: 2, 64>}, {pipeline_mode = #tpu.pipeline_mode<synchronous>, transform_indices = @transform_1, window_bounds = array<i64: 64, 128>}, {transform_indices = @transform_2, window_bounds = array<i64: 2, 128>}]} {
    %c0 = arith.constant 0 : index
    %c0_0 = arith.constant 0 : index
    %0 = vector.load %arg1[%c0, %c0_0] : memref<2x64xf32, #tpu.memory_space<vmem>>, vector<2x64xf32>
    %c0_1 = arith.constant 0 : index
    %c0_2 = arith.constant 0 : index
    %1 = vector.load %arg2[%c0_1, %c0_2] : memref<64x128xf32, #tpu.memory_space<vmem>>, vector<64x128xf32>
    %cst = arith.constant dense<0.000000e+00> : vector<2x128xf32>
    %2 = tpu.matmul %0, %1, %cst {dimension_numbers = #tpu.dot_dimension_numbers<[1], [0], [0], [1], [0, 0, 1, 1], [], []>, precision = #tpu.contract_precision<fp32>} : vector<2x64xf32>, vector<64x128xf32>, vector<2x128xf32> -> vector<2x128xf32>
    %c0_3 = arith.constant 0 : index
    %c0_4 = arith.constant 0 : index
    %3 = vector.load %arg3[%c0_3, %c0_4] : memref<2x128xf32, #tpu.memory_space<vmem>>, vector<2x128xf32>
    tpu.vector_store %arg3[%c0_3, %c0_4], %2 {strides = array<i32>} : memref<2x128xf32, #tpu.memory_space<vmem>>, vector<2x128xf32>,
    return
  }
  func.func @transform_0(%arg0: i32) -> (i32, i32) {
    %c0_i32 = arith.constant 0 : i32
    %c0_i32_0 = arith.constant 0 : i32
    return %arg0, %c0_i32 : i32, i32
  }
  func.func @transform_1(%arg0: i32) -> (i32, i32) {
    %c0_i32 = arith.constant 0 : i32
    %c0_i32_0 = arith.constant 0 : i32
    %c0_i32_1 = arith.constant 0 : i32
    return %c0_i32, %c0_i32_0 : i32, i32
  }
  func.func @transform_2(%arg0: i32) -> (i32, i32) {
    %c0_i32 = arith.constant 0 : i32
    %c0_i32_0 = arith.constant 0 : i32
    return %arg0, %c0_i32 : i32, i32
  }
}

</mosaic_0001>

<llo_original>
// kernel: tpu_custom_call.1
$region0: #{tpu_custom_call.1}
  #allocation0 [shape = 'u32[]', space=smem, size = 0x4, offset = 0x4, fixed_abs, tag = 'smem constant byte address 0x4 - core index']
  #allocation1 [shape = 'u32[144,128]{1,0:T(1,128)}', space=vmem, size = 0x12000, scoped, tag = 'internal scratch']
  %s0 = inlined_call_operand.hbm [shape: f32[2,64], index: 0, kind: input, shape index: {}]
  %s1 = inlined_call_operand.hbm [shape: f32[64,128], index: 1, kind: input, shape index: {}]
  %s2 = inlined_call_operand.hbm [shape: f32[2,128], index: 2, kind: output, shape index: {}]
  %s3 = sld [smem:[#allocation0]]
  $region26: #{tpu_custom_call.1} parent=0
    _
  %s5 = ssub.s32 1, %s3
  %s6 = scalar_select 0, %s5, %s3
  $region1: #{tpu_custom_call.1} parent=0
    #allocation2 [shape = 'u8[1024]{0}', space=vmem, size = 0x400, scoped, tag = 'input window, operand 0, single buffered']
    #allocation3 [shape = 's32[1]{0}', space=sflag, size = 0x4, scoped, tag = 'scoped memory for tpu_custom_call.1']
    #allocation4 [shape = 's32[1]{0}', space=sflag, size = 0x4, scoped, tag = 'scoped memory for tpu_custom_call.1']
    #allocation5 [shape = 'u8[32768]{0}', space=vmem, size = 0x8000, scoped, tag = 'input window, operand 1, single buffered']
    #allocation6 [shape = 's32[1]{0}', space=sflag, size = 0x4, scoped, tag = 'scoped memory for tpu_custom_call.1']
    #allocation7 [shape = 'u8[1024]{0}', space=vmem, size = 0x400, scoped, tag = 'output window, operand 0, single buffered']
    %7 = vsyncpa [#allocation3], 0
    %8 = vsyncpa [#allocation6], 0
    %9 = vsyncpa [#allocation4], 0
    // Predicated region
    $region2: #{tpu_custom_call.1} parent=1 // pred_check
      _
    $region3: #{tpu_custom_call.1} parent=1 // pred_check_branch
      %11 = sbr.rel (0) target = $region5
    $region4: #{tpu_custom_call.1} parent=1 // pred_region
      %s13 = ssub.s32 32, 32
      %14 = vsyncadd [#allocation3], %s13
      %s16 = sshll.u32 [#allocation2], 4
      %s17 = int_to_ptr.vmem [resolvable:$true] %s16
      %19 = dma.hbm_to_vmem [thread:$0]  %s0, 32, %s17, [#allocation3]
    $region5: #{tpu_custom_call.1} parent=1 // pred_fallthru
      _
    // Predicated region
    $region6: #{tpu_custom_call.1} parent=1 // pred_check
      _
    $region7: #{tpu_custom_call.1} parent=1 // pred_check_branch
      %21 = sbr.rel (0) target = $region9
    $region8: #{tpu_custom_call.1} parent=1 // pred_region
      %s23 = ssub.s32 1024, 1024
      %24 = vsyncadd [#allocation6], %s23
      %s25 = sshll.u32 [#allocation5], 4
      %s26 = int_to_ptr.vmem [resolvable:$true] %s25
      %31 = dma.hbm_to_vmem [thread:$0]  %s1, 1024, %s26, [#allocation6], 128, 128, 8
    $region9: #{tpu_custom_call.1} parent=1 // pred_fallthru
      _
    // Predicated region
    $region10: #{tpu_custom_call.1} parent=1 // pred_check
      _
    $region11: #{tpu_custom_call.1} parent=1 // pred_check_branch
      %33 = sbr.rel (0) target = $region13
    $region12: #{tpu_custom_call.1} parent=1 // pred_region
      %34 = dma.done [#allocation3], 32
    $region13: #{tpu_custom_call.1} parent=1 // pred_fallthru
      _
    // Predicated region
    $region14: #{tpu_custom_call.1} parent=1 // pred_check
      _
    $region15: #{tpu_custom_call.1} parent=1 // pred_check_branch
      %36 = sbr.rel (0) target = $region17
    $region16: #{tpu_custom_call.1} parent=1 // pred_region
      %37 = dma.done [#allocation6], 1024
    $region17: #{tpu_custom_call.1} parent=1 // pred_fallthru
      _
    %v38 = vld [vmem:[#allocation2] sm:$0x3]
    %v39 = vld [vmem:[#allocation5] sm:$0xff]
    %v40 = vld [vmem:[#allocation5 + $0x8] sm:$0xff]
    %v41 = vld [vmem:[#allocation5 + $0x10] sm:$0xff]
    %v42 = vld [vmem:[#allocation5 + $0x18] sm:$0xff]
    %v43 = vld [vmem:[#allocation5 + $0x20] sm:$0xff]
    %v44 = vld [vmem:[#allocation5 + $0x28] sm:$0xff]
    %v45 = vld [vmem:[#allocation5 + $0x30] sm:$0xff]
    %v46 = vld [vmem:[#allocation5 + $0x38] sm:$0xff]
    %vm47 = vcmask 523264
    %v49 = vsel %vm47, %v38, 0
    %51 = vmatprep.subr.mxu0 0.0
    %52 = vmatpush1.msra.mxu0 0.0
    %53 = vmatprep.subr.mxu0 0.0
    %54 = vmatpush1.msra.mxu0 0.0
    %55 = vmatprep.subr.mxu0 0.0
    %56 = vmatpush1.msra.mxu0 0.0
    %57 = vmatprep.subr.mxu0 0.0
    %58 = vmatpush1.msra.mxu0 0.0
    %59 = vmatprep.subr.mxu0 0.0
    %60 = vmatpush1.msra.mxu0 0.0
    %61 = vmatprep.subr.mxu0 0.0
    %62 = vmatpush1.msra.mxu0 0.0
    %63 = vmatprep.subr.mxu0 0.0
    %64 = vmatpush1.msra.mxu0 0.0
    %65 = vmatprep.subr.mxu0 0.0
    %66 = vmatpush1.msra.mxu0 0.0
    %67 = vmatprep.subr.mxu0 0.0
    %v68 = vand.u32 %v46, 4294901760
    %69 = vmatpush1.msra.mxu0 %v68
    %70 = vmatprep.subr.mxu0 0.0
    %v71 = vand.u32 %v45, 4294901760
    %72 = vmatpush1.msra.mxu0 %v71
    %73 = vmatprep.subr.mxu0 0.0
    %v74 = vand.u32 %v44, 4294901760
    %75 = vmatpush1.msra.mxu0 %v74
    %76 = vmatprep.subr.mxu0 0.0
    %v77 = vand.u32 %v43, 4294901760
    %78 = vmatpush1.msra.mxu0 %v77
    %79 = vmatprep.subr.mxu0 0.0
    %v80 = vand.u32 %v42, 4294901760
    %81 = vmatpush1.msra.mxu0 %v80
    %82 = vmatprep.subr.mxu0 0.0
    %v83 = vand.u32 %v41, 4294901760
    %84 = vmatpush1.msra.mxu0 %v83
    %85 = vmatprep.subr.mxu0 0.0
    %v86 = vand.u32 %v40, 4294901760
    %87 = vmatpush1.msra.mxu0 %v86
    %88 = vmatprep.subr.mxu0 0.0
    %v89 = vand.u32 %v39, 4294901760
    %90 = vmatpush1.msra.mxu0 %v89
    %91 = vmatprep.subr.mxu0 0.0
    %92 = vmatpush2.msra.mxu0 0.0
    %93 = vmatprep.subr.mxu0 0.0
    %94 = vmatpush2.msra.mxu0 0.0
    %95 = vmatprep.subr.mxu0 0.0
    %96 = vmatpush2.msra.mxu0 0.0
    %97 = vmatprep.subr.mxu0 0.0
    %98 = vmatpush2.msra.mxu0 0.0
    %99 = vmatprep.subr.mxu0 0.0
    %100 = vmatpush2.msra.mxu0 0.0
    %101 = vmatprep.subr.mxu0 0.0
    %102 = vmatpush2.msra.mxu0 0.0
    %103 = vmatprep.subr.mxu0 0.0
    %104 = vmatpush2.msra.mxu0 0.0
    %105 = vmatprep.subr.mxu0 0.0
    %106 = vmatpush2.msra.mxu0 0.0
    %107 = vmatprep.subr.mxu0 0.0
    %108 = vmatpush2.msra.mxu0 0.0
    %109 = vmatprep.subr.mxu0 0.0
    %110 = vmatpush2.msra.mxu0 0.0
    %111 = vmatprep.subr.mxu0 0.0
    %112 = vmatpush2.msra.mxu0 0.0
    %113 = vmatprep.subr.mxu0 0.0
    %114 = vmatpush2.msra.mxu0 0.0
    %115 = vmatprep.subr.mxu0 0.0
    %116 = vmatpush2.msra.mxu0 0.0
    %117 = vmatprep.subr.mxu0 0.0
    %118 = vmatpush2.msra.mxu0 0.0
    %119 = vmatprep.subr.mxu0 0.0
    %120 = vmatpush2.msra.mxu0 0.0
    %121 = vmatprep.subr.mxu0 0.0
    %122 = vmatpush2.msra.mxu0 0.0
    %123 = vmatprep.mubr.f32.mxu0 0.0
    %v124 = vand.u32 %v49, 4294901760
    %v125 = vsub.f32 %v49, %v124
    %v126 = vand.u32 %v125, 4294901760
    %v127 = vsub.f32 %v125, %v126
    %v128 = vand.u32 %v127, 4294901760
    %129 = vmatmul.mubr.f32.gmra.mxu0 %v128
    %v130 = vpop.f32.mrf.mxu0
    %v131 = vadd.f32 0.0, %v130
    %v132 = vpop.f32.mrf.mxu0
    %133 = vdwg.mxu0
    %134 = vmatprep.subr.mxu0 0.0
    %135 = vmatpush1.msra.mxu0 0.0
    %136 = vmatprep.subr.mxu0 0.0
    %137 = vmatpush1.msra.mxu0 0.0
    %138 = vmatprep.subr.mxu0 0.0
    %139 = vmatpush1.msra.mxu0 0.0
    %140 = vmatprep.subr.mxu0 0.0
    %141 = vmatpush1.msra.mxu0 0.0
    %142 = vmatprep.subr.mxu0 0.0
    %143 = vmatpush1.msra.mxu0 0.0
    %144 = vmatprep.subr.mxu0 0.0
    %145 = vmatpush1.msra.mxu0 0.0
    %146 = vmatprep.subr.mxu0 0.0
    %147 = vmatpush1.msra.mxu0 0.0
    %148 = vmatprep.subr.mxu0 0.0
    %149 = vmatpush1.msra.mxu0 0.0
    %150 = vmatprep.subr.mxu0 0.0
    %v151 = vand.u32 %v46, 4294901760
    %v152 = vsub.f32 %v46, %v151
    %v153 = vand.u32 %v152, 4294901760
    %v154 = vsub.f32 %v152, %v153
    %v155 = vand.u32 %v154, 4294901760
    %156 = vmatpush1.msra.mxu0 %v155
    %157 = vmatprep.subr.mxu0 0.0
    %v158 = vand.u32 %v45, 4294901760
    %v159 = vsub.f32 %v45, %v158
    %v160 = vand.u32 %v159, 4294901760
    %v161 = vsub.f32 %v159, %v160
    %v162 = vand.u32 %v161, 4294901760
    %163 = vmatpush1.msra.mxu0 %v162
    %164 = vmatprep.subr.mxu0 0.0
    %v165 = vand.u32 %v44, 4294901760
    %v166 = vsub.f32 %v44, %v165
    %v167 = vand.u32 %v166, 4294901760
    %v168 = vsub.f32 %v166, %v167
    %v169 = vand.u32 %v168, 4294901760
    %170 = vmatpush1.msra.mxu0 %v169
    %171 = vmatprep.subr.mxu0 0.0
    %v172 = vand.u32 %v43, 4294901760
    %v173 = vsub.f32 %v43, %v172
    %v174 = vand.u32 %v173, 4294901760
    %v175 = vsub.f32 %v173, %v174
    %v176 = vand.u32 %v175, 4294901760
    %177 = vmatpush1.msra.mxu0 %v176
    %178 = vmatprep.subr.mxu0 0.0
    %v179 = vand.u32 %v42, 4294901760
    %v180 = vsub.f32 %v42, %v179
    %v181 = vand.u32 %v180, 4294901760
    %v182 = vsub.f32 %v180, %v181
    %v183 = vand.u32 %v182, 4294901760
    %184 = vmatpush1.msra.mxu0 %v183
    %185 = vmatprep.subr.mxu0 0.0
    %v186 = vand.u32 %v41, 4294901760
    %v187 = vsub.f32 %v41, %v186
    %v188 = vand.u32 %v187, 4294901760
    %v189 = vsub.f32 %v187, %v188
    %v190 = vand.u32 %v189, 4294901760
    %191 = vmatpush1.msra.mxu0 %v190
    %192 = vmatprep.subr.mxu0 0.0
    %v193 = vand.u32 %v40, 4294901760
    %v194 = vsub.f32 %v40, %v193
    %v195 = vand.u32 %v194, 4294901760
    %v196 = vsub.f32 %v194, %v195
    %v197 = vand.u32 %v196, 4294901760
    %198 = vmatpush1.msra.mxu0 %v197
    %199 = vmatprep.subr.mxu0 0.0
    %v200 = vand.u32 %v39, 4294901760
    %v201 = vsub.f32 %v39, %v200
    %v202 = vand.u32 %v201, 4294901760
    %v203 = vsub.f32 %v201, %v202
    %v204 = vand.u32 %v203, 4294901760
    %205 = vmatpush1.msra.mxu0 %v204
    %206 = vmatprep.subr.mxu0 0.0
    %207 = vmatpush2.msra.mxu0 0.0
    %208 = vmatprep.subr.mxu0 0.0
    %209 = vmatpush2.msra.mxu0 0.0
    %210 = vmatprep.subr.mxu0 0.0
    %211 = vmatpush2.msra.mxu0 0.0
    %212 = vmatprep.subr.mxu0 0.0
    %213 = vmatpush2.msra.mxu0 0.0
    %214 = vmatprep.subr.mxu0 0.0
    %215 = vmatpush2.msra.mxu0 0.0
    %216 = vmatprep.subr.mxu0 0.0
    %217 = vmatpush2.msra.mxu0 0.0
    %218 = vmatprep.subr.mxu0 0.0
    %219 = vmatpush2.msra.mxu0 0.0
    %220 = vmatprep.subr.mxu0 0.0
    %221 = vmatpush2.msra.mxu0 0.0
    %222 = vmatprep.subr.mxu0 0.0
    %223 = vmatpush2.msra.mxu0 0.0
    %224 = vmatprep.subr.mxu0 0.0
    %225 = vmatpush2.msra.mxu0 0.0
    %226 = vmatprep.subr.mxu0 0.0
    %227 = vmatpush2.msra.mxu0 0.0
    %228 = vmatprep.subr.mxu0 0.0
    %229 = vmatpush2.msra.mxu0 0.0
    %230 = vmatprep.subr.mxu0 0.0
    %231 = vmatpush2.msra.mxu0 0.0
    %232 = vmatprep.subr.mxu0 0.0
    %233 = vmatpush2.msra.mxu0 0.0
    %234 = vmatprep.subr.mxu0 0.0
    %235 = vmatpush2.msra.mxu0 0.0
    %236 = vmatprep.subr.mxu0 0.0
    %237 = vmatpush2.msra.mxu0 0.0
    %238 = vmatprep.mubr.f32.mxu0 0.0
    %v239 = vand.u32 %v49, 4294901760
    %240 = vmatmul.mubr.f32.gmra.mxu0 %v239
    %v241 = vpop.f32.mrf.mxu0
    %v242 = vadd.f32 %v131, %v241
    %v243 = vpop.f32.mrf.mxu0
    %244 = vdwg.mxu0
    %245 = vmatprep.subr.mxu0 0.0
    %246 = vmatpush1.msra.mxu0 0.0
    %247 = vmatprep.subr.mxu0 0.0
    %248 = vmatpush1.msra.mxu0 0.0
    %249 = vmatprep.subr.mxu0 0.0
    %250 = vmatpush1.msra.mxu0 0.0
    %251 = vmatprep.subr.mxu0 0.0
    %252 = vmatpush1.msra.mxu0 0.0
    %253 = vmatprep.subr.mxu0 0.0
    %254 = vmatpush1.msra.mxu0 0.0
    %255 = vmatprep.subr.mxu0 0.0
    %256 = vmatpush1.msra.mxu0 0.0
    %257 = vmatprep.subr.mxu0 0.0
    %258 = vmatpush1.msra.mxu0 0.0
    %259 = vmatprep.subr.mxu0 0.0
    %260 = vmatpush1.msra.mxu0 0.0
    %261 = vmatprep.subr.mxu0 0.0
    %v262 = vand.u32 %v46, 4294901760
    %v263 = vsub.f32 %v46, %v262
    %264 = vmatpush1.msra.mxu0 %v263
    %265 = vmatprep.subr.mxu0 0.0
    %v266 = vand.u32 %v45, 4294901760
    %v267 = vsub.f32 %v45, %v266
    %268 = vmatpush1.msra.mxu0 %v267
    %269 = vmatprep.subr.mxu0 0.0
    %v270 = vand.u32 %v44, 4294901760
    %v271 = vsub.f32 %v44, %v270
    %272 = vmatpush1.msra.mxu0 %v271
    %273 = vmatprep.subr.mxu0 0.0
    %v274 = vand.u32 %v43, 4294901760
    %v275 = vsub.f32 %v43, %v274
    %276 = vmatpush1.msra.mxu0 %v275
    %277 = vmatprep.subr.mxu0 0.0
    %v278 = vand.u32 %v42, 4294901760
    %v279 = vsub.f32 %v42, %v278
    %280 = vmatpush1.msra.mxu0 %v279
    %281 = vmatprep.subr.mxu0 0.0
    %v282 = vand.u32 %v41, 4294901760
    %v283 = vsub.f32 %v41, %v282
    %284 = vmatpush1.msra.mxu0 %v283
    %285 = vmatprep.subr.mxu0 0.0
    %v286 = vand.u32 %v40, 4294901760
    %v287 = vsub.f32 %v40, %v286
    %288 = vmatpush1.msra.mxu0 %v287
    %289 = vmatprep.subr.mxu0 0.0
    %v290 = vand.u32 %v39, 4294901760
    %v291 = vsub.f32 %v39, %v290
    %292 = vmatpush1.msra.mxu0 %v291
    %293 = vmatprep.subr.mxu0 0.0
    %294 = vmatpush2.msra.mxu0 0.0
    %295 = vmatprep.subr.mxu0 0.0
    %296 = vmatpush2.msra.mxu0 0.0
    %297 = vmatprep.subr.mxu0 0.0
    %298 = vmatpush2.msra.mxu0 0.0
    %299 = vmatprep.subr.mxu0 0.0
    %300 = vmatpush2.msra.mxu0 0.0
    %301 = vmatprep.subr.mxu0 0.0
    %302 = vmatpush2.msra.mxu0 0.0
    %303 = vmatprep.subr.mxu0 0.0
    %304 = vmatpush2.msra.mxu0 0.0
    %305 = vmatprep.subr.mxu0 0.0
    %306 = vmatpush2.msra.mxu0 0.0
    %307 = vmatprep.subr.mxu0 0.0
    %308 = vmatpush2.msra.mxu0 0.0
    %309 = vmatprep.subr.mxu0 0.0
    %310 = vmatpush2.msra.mxu0 0.0
    %311 = vmatprep.subr.mxu0 0.0
    %312 = vmatpush2.msra.mxu0 0.0
    %313 = vmatprep.subr.mxu0 0.0
    %314 = vmatpush2.msra.mxu0 0.0
    %315 = vmatprep.subr.mxu0 0.0
    %316 = vmatpush2.msra.mxu0 0.0
    %317 = vmatprep.subr.mxu0 0.0
    %318 = vmatpush2.msra.mxu0 0.0
    %319 = vmatprep.subr.mxu0 0.0
    %320 = vmatpush2.msra.mxu0 0.0
    %321 = vmatprep.subr.mxu0 0.0
    %322 = vmatpush2.msra.mxu0 0.0
    %323 = vmatprep.subr.mxu0 0.0
    %324 = vmatpush2.msra.mxu0 0.0
    %325 = vmatprep.mubr.f32.mxu0 0.0
    %v326 = vand.u32 %v49, 4294901760
    %v327 = vsub.f32 %v49, %v326
    %328 = vmatmul.mubr.f32.gmra.mxu0 %v327
    %v329 = vpop.f32.mrf.mxu0
    %v330 = vadd.f32 %v242, %v329
    %v331 = vpop.f32.mrf.mxu0
    %332 = vdwg.mxu0
    %333 = vmatprep.subr.mxu0 0.0
    %334 = vmatpush1.msra.mxu0 0.0
    %335 = vmatprep.subr.mxu0 0.0
    %336 = vmatpush1.msra.mxu0 0.0
    %337 = vmatprep.subr.mxu0 0.0
    %338 = vmatpush1.msra.mxu0 0.0
    %339 = vmatprep.subr.mxu0 0.0
    %340 = vmatpush1.msra.mxu0 0.0
    %341 = vmatprep.subr.mxu0 0.0
    %342 = vmatpush1.msra.mxu0 0.0
    %343 = vmatprep.subr.mxu0 0.0
    %344 = vmatpush1.msra.mxu0 0.0
    %345 = vmatprep.subr.mxu0 0.0
    %346 = vmatpush1.msra.mxu0 0.0
    %347 = vmatprep.subr.mxu0 0.0
    %348 = vmatpush1.msra.mxu0 0.0
    %349 = vmatprep.subr.mxu0 0.0
    %v350 = vand.u32 %v46, 4294901760
    %351 = vmatpush1.msra.mxu0 %v350
    %352 = vmatprep.subr.mxu0 0.0
    %v353 = vand.u32 %v45, 4294901760
    %354 = vmatpush1.msra.mxu0 %v353
    %355 = vmatprep.subr.mxu0 0.0
    %v356 = vand.u32 %v44, 4294901760
    %357 = vmatpush1.msra.mxu0 %v356
    %358 = vmatprep.subr.mxu0 0.0
    %v359 = vand.u32 %v43, 4294901760
    %360 = vmatpush1.msra.mxu0 %v359
    %361 = vmatprep.subr.mxu0 0.0
    %v362 = vand.u32 %v42, 4294901760
    %363 = vmatpush1.msra.mxu0 %v362
    %364 = vmatprep.subr.mxu0 0.0
    %v365 = vand.u32 %v41, 4294901760
    %366 = vmatpush1.msra.mxu0 %v365
    %367 = vmatprep.subr.mxu0 0.0
    %v368 = vand.u32 %v40, 4294901760
    %369 = vmatpush1.msra.mxu0 %v368
    %370 = vmatprep.subr.mxu0 0.0
    %v371 = vand.u32 %v39, 4294901760
    %372 = vmatpush1.msra.mxu0 %v371
    %373 = vmatprep.subr.mxu0 0.0
    %374 = vmatpush2.msra.mxu0 0.0
    %375 = vmatprep.subr.mxu0 0.0
    %376 = vmatpush2.msra.mxu0 0.0
    %377 = vmatprep.subr.mxu0 0.0
    %378 = vmatpush2.msra.mxu0 0.0
    %379 = vmatprep.subr.mxu0 0.0
    %380 = vmatpush2.msra.mxu0 0.0
    %381 = vmatprep.subr.mxu0 0.0
    %382 = vmatpush2.msra.mxu0 0.0
    %383 = vmatprep.subr.mxu0 0.0
    %384 = vmatpush2.msra.mxu0 0.0
    %385 = vmatprep.subr.mxu0 0.0
    %386 = vmatpush2.msra.mxu0 0.0
    %387 = vmatprep.subr.mxu0 0.0
    %388 = vmatpush2.msra.mxu0 0.0
    %389 = vmatprep.subr.mxu0 0.0
    %390 = vmatpush2.msra.mxu0 0.0
    %391 = vmatprep.subr.mxu0 0.0
    %392 = vmatpush2.msra.mxu0 0.0
    %393 = vmatprep.subr.mxu0 0.0
    %394 = vmatpush2.msra.mxu0 0.0
    %395 = vmatprep.subr.mxu0 0.0
    %396 = vmatpush2.msra.mxu0 0.0
    %397 = vmatprep.subr.mxu0 0.0
    %398 = vmatpush2.msra.mxu0 0.0
    %399 = vmatprep.subr.mxu0 0.0
    %400 = vmatpush2.msra.mxu0 0.0
    %401 = vmatprep.subr.mxu0 0.0
    %402 = vmatpush2.msra.mxu0 0.0
    %403 = vmatprep.subr.mxu0 0.0
    %404 = vmatpush2.msra.mxu0 0.0
    %405 = vmatprep.mubr.f32.mxu0 0.0
    %v406 = vand.u32 %v49, 4294901760
    %v407 = vsub.f32 %v49, %v406
    %v408 = vand.u32 %v407, 4294901760
    %409 = vmatmul.mubr.f32.gmra.mxu0 %v408
    %v410 = vpop.f32.mrf.mxu0
    %v411 = vadd.f32 %v330, %v410
    %v412 = vpop.f32.mrf.mxu0
    %413 = vdwg.mxu0
    %414 = vmatprep.subr.mxu0 0.0
    %415 = vmatpush1.msra.mxu0 0.0
    %416 = vmatprep.subr.mxu0 0.0
    %417 = vmatpush1.msra.mxu0 0.0
    %418 = vmatprep.subr.mxu0 0.0
    %419 = vmatpush1.msra.mxu0 0.0
    %420 = vmatprep.subr.mxu0 0.0
    %421 = vmatpush1.msra.mxu0 0.0
    %422 = vmatprep.subr.mxu0 0.0
    %423 = vmatpush1.msra.mxu0 0.0
    %424 = vmatprep.subr.mxu0 0.0
    %425 = vmatpush1.msra.mxu0 0.0
    %426 = vmatprep.subr.mxu0 0.0
    %427 = vmatpush1.msra.mxu0 0.0
    %428 = vmatprep.subr.mxu0 0.0
    %429 = vmatpush1.msra.mxu0 0.0
    %430 = vmatprep.subr.mxu0 0.0
    %v431 = vand.u32 %v46, 4294901760
    %v432 = vsub.f32 %v46, %v431
    %v433 = vand.u32 %v432, 4294901760
    %434 = vmatpush1.msra.mxu0 %v433
    %435 = vmatprep.subr.mxu0 0.0
    %v436 = vand.u32 %v45, 4294901760
    %v437 = vsub.f32 %v45, %v436
    %v438 = vand.u32 %v437, 4294901760
    %439 = vmatpush1.msra.mxu0 %v438
    %440 = vmatprep.subr.mxu0 0.0
    %v441 = vand.u32 %v44, 4294901760
    %v442 = vsub.f32 %v44, %v441
    %v443 = vand.u32 %v442, 4294901760
    %444 = vmatpush1.msra.mxu0 %v443
    %445 = vmatprep.subr.mxu0 0.0
    %v446 = vand.u32 %v43, 4294901760
    %v447 = vsub.f32 %v43, %v446
    %v448 = vand.u32 %v447, 4294901760
    %449 = vmatpush1.msra.mxu0 %v448
    %450 = vmatprep.subr.mxu0 0.0
    %v451 = vand.u32 %v42, 4294901760
    %v452 = vsub.f32 %v42, %v451
    %v453 = vand.u32 %v452, 4294901760
    %454 = vmatpush1.msra.mxu0 %v453
    %455 = vmatprep.subr.mxu0 0.0
    %v456 = vand.u32 %v41, 4294901760
    %v457 = vsub.f32 %v41, %v456
    %v458 = vand.u32 %v457, 4294901760
    %459 = vmatpush1.msra.mxu0 %v458
    %460 = vmatprep.subr.mxu0 0.0
    %v461 = vand.u32 %v40, 4294901760
    %v462 = vsub.f32 %v40, %v461
    %v463 = vand.u32 %v462, 4294901760
    %464 = vmatpush1.msra.mxu0 %v463
    %465 = vmatprep.subr.mxu0 0.0
    %v466 = vand.u32 %v39, 4294901760
    %v467 = vsub.f32 %v39, %v466
    %v468 = vand.u32 %v467, 4294901760
    %469 = vmatpush1.msra.mxu0 %v468
    %470 = vmatprep.subr.mxu0 0.0
    %471 = vmatpush2.msra.mxu0 0.0
    %472 = vmatprep.subr.mxu0 0.0
    %473 = vmatpush2.msra.mxu0 0.0
    %474 = vmatprep.subr.mxu0 0.0
    %475 = vmatpush2.msra.mxu0 0.0
    %476 = vmatprep.subr.mxu0 0.0
    %477 = vmatpush2.msra.mxu0 0.0
    %478 = vmatprep.subr.mxu0 0.0
    %479 = vmatpush2.msra.mxu0 0.0
    %480 = vmatprep.subr.mxu0 0.0
    %481 = vmatpush2.msra.mxu0 0.0
    %482 = vmatprep.subr.mxu0 0.0
    %483 = vmatpush2.msra.mxu0 0.0
    %484 = vmatprep.subr.mxu0 0.0
    %485 = vmatpush2.msra.mxu0 0.0
    %486 = vmatprep.subr.mxu0 0.0
    %487 = vmatpush2.msra.mxu0 0.0
    %488 = vmatprep.subr.mxu0 0.0
    %489 = vmatpush2.msra.mxu0 0.0
    %490 = vmatprep.subr.mxu0 0.0
    %491 = vmatpush2.msra.mxu0 0.0
    %492 = vmatprep.subr.mxu0 0.0
    %493 = vmatpush2.msra.mxu0 0.0
    %494 = vmatprep.subr.mxu0 0.0
    %495 = vmatpush2.msra.mxu0 0.0
    %496 = vmatprep.subr.mxu0 0.0
    %497 = vmatpush2.msra.mxu0 0.0
    %498 = vmatprep.subr.mxu0 0.0
    %499 = vmatpush2.msra.mxu0 0.0
    %500 = vmatprep.subr.mxu0 0.0
    %501 = vmatpush2.msra.mxu0 0.0
    %502 = vmatprep.mubr.f32.mxu0 0.0
    %v503 = vand.u32 %v49, 4294901760
    %504 = vmatmul.mubr.f32.gmra.mxu0 %v503
    %v505 = vpop.f32.mrf.mxu0
    %v506 = vadd.f32 %v411, %v505
    %v507 = vpop.f32.mrf.mxu0
    %508 = vdwg.mxu0
    %509 = vmatprep.subr.mxu0 0.0
    %510 = vmatpush1.msra.mxu0 0.0
    %511 = vmatprep.subr.mxu0 0.0
    %512 = vmatpush1.msra.mxu0 0.0
    %513 = vmatprep.subr.mxu0 0.0
    %514 = vmatpush1.msra.mxu0 0.0
    %515 = vmatprep.subr.mxu0 0.0
    %516 = vmatpush1.msra.mxu0 0.0
    %517 = vmatprep.subr.mxu0 0.0
    %518 = vmatpush1.msra.mxu0 0.0
    %519 = vmatprep.subr.mxu0 0.0
    %520 = vmatpush1.msra.mxu0 0.0
    %521 = vmatprep.subr.mxu0 0.0
    %522 = vmatpush1.msra.mxu0 0.0
    %523 = vmatprep.subr.mxu0 0.0
    %524 = vmatpush1.msra.mxu0 0.0
    %525 = vmatprep.subr.mxu0 0.0
    %v526 = vand.u32 %v46, 4294901760
    %527 = vmatpush1.msra.mxu0 %v526
    %528 = vmatprep.subr.mxu0 0.0
    %v529 = vand.u32 %v45, 4294901760
    %530 = vmatpush1.msra.mxu0 %v529
    %531 = vmatprep.subr.mxu0 0.0
    %v532 = vand.u32 %v44, 4294901760
    %533 = vmatpush1.msra.mxu0 %v532
    %534 = vmatprep.subr.mxu0 0.0
    %v535 = vand.u32 %v43, 4294901760
    %536 = vmatpush1.msra.mxu0 %v535
    %537 = vmatprep.subr.mxu0 0.0
    %v538 = vand.u32 %v42, 4294901760
    %539 = vmatpush1.msra.mxu0 %v538
    %540 = vmatprep.subr.mxu0 0.0
    %v541 = vand.u32 %v41, 4294901760
    %542 = vmatpush1.msra.mxu0 %v541
    %543 = vmatprep.subr.mxu0 0.0
    %v544 = vand.u32 %v40, 4294901760
    %545 = vmatpush1.msra.mxu0 %v544
    %546 = vmatprep.subr.mxu0 0.0
    %v547 = vand.u32 %v39, 4294901760
    %548 = vmatpush1.msra.mxu0 %v547
    %549 = vmatprep.subr.mxu0 0.0
    %550 = vmatpush2.msra.mxu0 0.0
    %551 = vmatprep.subr.mxu0 0.0
    %552 = vmatpush2.msra.mxu0 0.0
    %553 = vmatprep.subr.mxu0 0.0
    %554 = vmatpush2.msra.mxu0 0.0
    %555 = vmatprep.subr.mxu0 0.0
    %556 = vmatpush2.msra.mxu0 0.0
    %557 = vmatprep.subr.mxu0 0.0
    %558 = vmatpush2.msra.mxu0 0.0
    %559 = vmatprep.subr.mxu0 0.0
    %560 = vmatpush2.msra.mxu0 0.0
    %561 = vmatprep.subr.mxu0 0.0
    %562 = vmatpush2.msra.mxu0 0.0
    %563 = vmatprep.subr.mxu0 0.0
    %564 = vmatpush2.msra.mxu0 0.0
    %565 = vmatprep.subr.mxu0 0.0
    %566 = vmatpush2.msra.mxu0 0.0
    %567 = vmatprep.subr.mxu0 0.0
    %568 = vmatpush2.msra.mxu0 0.0
    %569 = vmatprep.subr.mxu0 0.0
    %570 = vmatpush2.msra.mxu0 0.0
    %571 = vmatprep.subr.mxu0 0.0
    %572 = vmatpush2.msra.mxu0 0.0
    %573 = vmatprep.subr.mxu0 0.0
    %574 = vmatpush2.msra.mxu0 0.0
    %575 = vmatprep.subr.mxu0 0.0
    %576 = vmatpush2.msra.mxu0 0.0
    %577 = vmatprep.subr.mxu0 0.0
    %578 = vmatpush2.msra.mxu0 0.0
    %579 = vmatprep.subr.mxu0 0.0
    %580 = vmatpush2.msra.mxu0 0.0
    %581 = vmatprep.mubr.f32.mxu0 0.0
    %v582 = vand.u32 %v49, 4294901760
    %583 = vmatmul.mubr.f32.gmra.mxu0 %v582
    %v584 = vpop.f32.mrf.mxu0
    %v585 = vadd.f32 %v506, %v584
    %v586 = vpop.f32.mrf.mxu0
    %587 = vdwg.mxu0
    %588 = vst [vmem:[#allocation7] sm:$0x3] %v585
    // Predicated region
    $region18: #{tpu_custom_call.1} parent=1 // pred_check
      _
    $region19: #{tpu_custom_call.1} parent=1 // pred_check_branch
      %590 = sbr.rel (0) target = $region21
    $region20: #{tpu_custom_call.1} parent=1 // pred_region
      %s592 = ssub.s32 32, 32
      %593 = vsyncadd [#allocation4], %s592
      %s595 = sshll.u32 [#allocation7], 4
      %s596 = int_to_ptr.vmem [resolvable:$true] %s595
      %598 = dma.vmem_to_hbm [thread:$0]  %s596, 32, %s2, [#allocation4]
    $region21: #{tpu_custom_call.1} parent=1 // pred_fallthru
      _
    // Predicated region
    $region22: #{tpu_custom_call.1} parent=1 // pred_check
      _
    $region23: #{tpu_custom_call.1} parent=1 // pred_check_branch
      %600 = sbr.rel (0) target = $region25
    $region24: #{tpu_custom_call.1} parent=1 // pred_region
      %601 = dma.done [#allocation4], 32
    $region25: #{tpu_custom_call.1} parent=1 // pred_fallthru
      _
    %602 = vsyncpa [#allocation3], 1
    %603 = vsyncpa [#allocation6], 1
    %604 = vsyncpa [#allocation4], 1

</llo_original>
